<compile_context>
chip_gen: v5e
topology: v5e:2x2
jax: 0.10.0
libtpu: 0.0.40
codegen_flags: <defaults>
</compile_context>

<pallas_src>
import functools

import numpy as np
import jax
import jax.numpy as jnp
from jax import lax
from jax.experimental import pallas as pl
from jax.experimental.pallas import tpu as pltpu

H = W = 4
HW = H * W
EPS = 1e-5


def _input_block_kernel(latent_ref, noise_ref, w_ref, cs_ref, mavg_ref,
                        out_ref, *, c_out):
    f32 = jnp.float32
    b = latent_ref.shape[0]
    d_lat = latent_ref.shape[1]
    n_y = HW * c_out

    lat = latent_ref[...]                                           # (B, D)

    # One fused matmul: [AdaIn1 + conv + conv-bias | style2 scale | style2 bias].
    # Bias is folded in as the last row of w_ref (static, 8-aligned slices).
    big = (jnp.dot(lat, w_ref[:d_lat, :], preferred_element_type=f32)
           + w_ref[d_lat:d_lat + 1, :])                             # (B, n_y+2Cout)
    y = big[:, :n_y]                                                # (B, 128) full-tile slice
    ys2 = big[:, n_y:n_y + c_out]                                   # (B, Cout)
    yb2 = big[:, n_y + c_out:]                                      # (B, Cout)

    # LeakyReLU(0.2), then noise2 via an independent tiny matmul
    # (noise outer-product with the per-channel noise2 scale).
    y = jnp.maximum(y, 0.2 * y)
    y = y + jnp.dot(noise_ref[...], cs_ref[:HW, :],
                    preferred_element_type=f32)                     # (B, 128)

    # AdaIN2: both spatial moments with ONE matmul by stacking along M.
    yy = jnp.concatenate([y, y * y], axis=0)                        # (2B, 128)
    mom = jnp.dot(yy, mavg_ref[...], preferred_element_type=f32)    # (2B, Cout)
    mu = mom[:b]
    m2 = mom[b:]
    var = jnp.maximum(m2 - mu * mu, 0.0)                            # clamp (cancellation)
    gain = ys2 * lax.rsqrt(var + EPS)                               # (B, Cout)
    shift = yb2 - gain * mu                                         # (B, Cout)

    # Single broadcast matmul for both gain and shift, then fused apply.
    bc = jnp.dot(jnp.concatenate([gain, shift], axis=0),
                 cs_ref[HW:HW + c_out, :], preferred_element_type=f32)  # (2B, 128)
    out_ref[...] = bc[:b] * y + bc[b:]


def _make_shift_matrices():
    # S[k, p, q] = 1 iff input position q feeds output position p under tap k
    # of a 3x3 / pad-1 convolution on a 4x4 map.
    S = np.zeros((9, HW, HW), np.float32)
    for ki in range(3):
        for kj in range(3):
            k = ki * 3 + kj
            for i in range(H):
                for j in range(W):
                    ii, jj = i + ki - 1, j + kj - 1
                    if 0 <= ii < H and 0 <= jj < W:
                        S[k, i * W + j, ii * W + jj] = 1.0
    return jnp.asarray(S)


def fold_input_block_params(params):
    """Parameter-only precompute (hoist once per set of weights)."""
    const, n1, s1w, s1b, conv_w, cb, n2, s2w, s2b = params
    c_in = const.shape[1]
    c_out = conv_w.shape[0]
    d = s1w.shape[0]
    f32 = jnp.float32

    # Hoisted InstanceNorm(const * noise1-scale): identical for every sample.
    x0 = const[0].astype(f32) * n1.reshape(c_in, 1, 1)              # (Cin, 4, 4)
    mu0 = jnp.mean(x0, axis=(1, 2), keepdims=True)
    var0 = jnp.mean((x0 - mu0) ** 2, axis=(1, 2), keepdims=True)
    xn = (x0 - mu0) * lax.rsqrt(var0 + EPS)
    xn_flat = jnp.transpose(xn, (1, 2, 0)).reshape(1, HW * c_in)    # (1, HW*Cin)

    # AdaIn1 as a matrix acting on [ys1 | yb1]  (lane-dense layout p*Cin + c).
    e_in = jnp.tile(jnp.eye(c_in, dtype=f32), (1, HW))              # (Cin, HW*Cin)
    m1 = jnp.concatenate([e_in * xn_flat, e_in], axis=0)            # (2Cin, HW*Cin)

    # Fold style1 (weight + bias via augmented row) through AdaIn1 and the conv.
    sw1_aug = jnp.concatenate([s1w, s1b], axis=0)                   # (D+1, 2Cin)
    t_aug = (sw1_aug @ m1).reshape(d + 1, HW, c_in)                 # (D+1, HW, Cin)

    S = _make_shift_matrices()                                      # (9, HW, HW)
    wk = jnp.transpose(conv_w, (2, 3, 1, 0)).reshape(9, c_in, c_out)
    # (D+1, HW*Cout) fold; never materializes the (HW*Cin, HW*Cout) conv matrix,
    # so it scales with D and stays VMEM-safe at real widths (v7x: 64 MiB).
    pre_aug = jnp.einsum('dqi,kpq,kio->dpo', t_aug, S, wk).reshape(d + 1, HW * c_out)
    cb_e = jnp.tile(cb.reshape(1, c_out), (1, HW))                  # (1, HW*Cout)
    pre_aug = pre_aug.at[d].add(cb_e[0])                            # conv bias -> bias row

    # Append style2 columns so ONE matmul yields [pre-activation | ys2 | yb2].
    sw2_aug = jnp.concatenate([s2w, s2b], axis=0)                   # (D+1, 2Cout)
    w_aug = jnp.concatenate([pre_aug, sw2_aug], axis=1)             # (D+1, HW*Cout+2Cout)

    # Packed constant slab: rows [0:HW) = noise2 outer-product matrix,
    # rows [HW:HW+Cout) = channel->lane broadcast matrix.
    e_out = jnp.tile(jnp.eye(c_out, dtype=f32), (1, HW))            # (Cout, HW*Cout)
    n2mat = (jnp.eye(HW, dtype=f32)[:, :, None]
             * n2.reshape(1, 1, c_out)).reshape(HW, HW * c_out)     # (HW, HW*Cout)
    const_slab = jnp.concatenate([n2mat, e_out], axis=0)            # (HW+Cout, HW*Cout)
    mavg = e_out.T / float(HW)                                      # (HW*Cout, Cout)

    return w_aug, const_slab, mavg


def input_block_forward(latent, noise_nchw, folded, layout="NCHW"):
    """latent: (B, D) f32; noise_nchw: (B, 1, 4, 4) f32."""
    w_aug, const_slab, mavg = folded
    c_out = mavg.shape[1]
    b, d = latent.shape

    noise_flat = noise_nchw.reshape(b, HW)                          # contiguous (free)

    # Pad batch to a full f32 sublane group so matmuls / stores are full-tile.
    b_pad = -(-b // 8) * 8
    if b_pad != b:
        latent = jnp.pad(latent, ((0, b_pad - b), (0, 0)))
        noise_flat = jnp.pad(noise_flat, ((0, b_pad - b), (0, 0)))

    kernel = functools.partial(_input_block_kernel, c_out=c_out)
    vmem = pl.BlockSpec(memory_space=pltpu.MemorySpace.VMEM)
    out_flat = pl.pallas_call(
        kernel,
        out_shape=jax.ShapeDtypeStruct((b_pad, HW * c_out), jnp.float32),
        in_specs=[vmem] * 5,
        out_specs=vmem,
    )(latent, noise_flat, w_aug, const_slab, mavg)
    # TODO(synk): on v7x with large batches, add a 1-D "parallel" grid over the
    # padded batch to use both TensorCores; pointless on v5e/v6e (single TC).

    if layout == "NHWC_FLAT":
        # Lane-dense (B, HW*Cout) — preferred for fused downstream consumers.
        return out_flat[:b]
    # NCHW to match the PyTorch module's output layout.
    return out_flat[:b].reshape(b, H, W, c_out).transpose(0, 3, 1, 2)


# ------------------------- pure-JAX reference ---------------------------- #
def _inorm(x):
    mu = jnp.mean(x, axis=(2, 3), keepdims=True)
    var = jnp.mean((x - mu) ** 2, axis=(2, 3), keepdims=True)
    return (x - mu) / jnp.sqrt(var + EPS)


def reference_forward(latent, noise, raw):
    const, n1, s1w, s1b, conv_w, cb, n2, s2w, s2b, c_in, c_out = raw
    B = latent.shape[0]
    x = const * n1                                                  # (1, Cin, 4, 4)
    st1 = latent @ s1w + s1b
    ys1 = st1[:, :c_in].reshape(B, c_in, 1, 1)
    yb1 = st1[:, c_in:].reshape(B, c_in, 1, 1)
    x = ys1 * _inorm(x) + yb1                                       # (B, Cin, 4, 4)
    y = lax.conv_general_dilated(
        x, conv_w, window_strides=(1, 1), padding=((1, 1), (1, 1)),
        dimension_numbers=("NCHW", "OIHW", "NCHW")) + cb.reshape(1, c_out, 1, 1)
    y = jnp.where(y > 0, y, 0.2 * y)
    y = y + n2.reshape(1, c_out, 1, 1) * noise
    st2 = latent @ s2w + s2b
    ys2 = st2[:, :c_out].reshape(B, c_out, 1, 1)
    yb2 = st2[:, c_out:].reshape(B, c_out, 1, 1)
    return ys2 * _inorm(y) + yb2


# ------------------------------ main -------------------------------------- #
if __name__ == "__main__":
    B, c_in, c_out, D = 2, 8, 8, 32

    key = jax.random.PRNGKey(0)
    ks = jax.random.split(key, 11)

    # Parameters (deterministic synthetic init); equalized-lr scales folded in.
    const = jax.random.normal(ks[0], (1, c_in, H, W), jnp.float32)
    n1 = jax.random.normal(ks[1], (1, c_in), jnp.float32)           # Scaler(Cin)
    n2 = jax.random.normal(ks[2], (1, c_out), jnp.float32)          # Scaler(Cout)
    lin_scale = np.sqrt(2.0 / D).astype(np.float32)
    s1w = jax.random.normal(ks[3], (D, 2 * c_in), jnp.float32) * lin_scale
    s1b = jax.random.normal(ks[4], (1, 2 * c_in), jnp.float32) * 0.1
    s2w = jax.random.normal(ks[5], (D, 2 * c_out), jnp.float32) * lin_scale
    s2b = jax.random.normal(ks[6], (1, 2 * c_out), jnp.float32) * 0.1
    conv_scale = np.sqrt(2.0 / (c_in * 9)).astype(np.float32)
    conv_w = jax.random.normal(ks[7], (c_out, c_in, 3, 3), jnp.float32) * conv_scale
    cb = jax.random.normal(ks[8], (1, c_out), jnp.float32) * 0.1

    params = (const, n1, s1w, s1b, conv_w, cb, n2, s2w, s2b)
    folded = fold_input_block_params(params)                        # hoisted once

    # Inputs.
    latent = jax.random.normal(ks[9], (B, D), jnp.float32)
    noise = jax.random.normal(ks[10], (B, 1, H, W), jnp.float32)

    forward = jax.jit(input_block_forward, static_argnames=("layout",))
    out = forward(latent, noise, folded)
    out = jax.block_until_ready(out)

    ref = reference_forward(latent, noise,
                            (const, n1.reshape(1, c_in, 1, 1), s1w, s1b,
                             conv_w, cb, n2, s2w, s2b, c_in, c_out))
    err = float(jnp.max(jnp.abs(out - ref)))
    assert out.shape == (B, c_out, H, W), out.shape
    assert err < 1e-3, f"mismatch vs reference: {err}"
    print("KERNEL_OK")
</pallas_src>

<mosaic_0001>
module attributes {stable_mosaic.version = 11 : i64} {
  func.func @_input_block_kernel(%arg0: memref<8x32xf32, #tpu.memory_space<vmem>>, %arg1: memref<8x16xf32, #tpu.memory_space<vmem>>, %arg2: memref<33x144xf32, #tpu.memory_space<vmem>>, %arg3: memref<24x128xf32, #tpu.memory_space<vmem>>, %arg4: memref<128x8xf32, #tpu.memory_space<vmem>>, %arg5: memref<8x128xf32, #tpu.memory_space<vmem>>) attributes {dimension_semantics = [], scalar_prefetch = 0 : i64, scratch_operands = 0 : i64, tpu.core_type = #tpu.core_type<tc>} {
    %c0 = arith.constant 0 : index
    %c0_0 = arith.constant 0 : index
    %0 = vector.load %arg0[%c0, %c0_0] : memref<8x32xf32, #tpu.memory_space<vmem>>, vector<8x32xf32>
    %c0_1 = arith.constant 0 : index
    %c0_2 = arith.constant 0 : index
    %1 = vector.load %arg2[%c0_1, %c0_2] : memref<33x144xf32, #tpu.memory_space<vmem>>, vector<32x144xf32>
    %cst = arith.constant dense<0.000000e+00> : vector<8x144xf32>
    %2 = tpu.matmul %0, %1, %cst {dimension_numbers = #tpu.dot_dimension_numbers<[1], [0], [0], [1], [0, 0, 1, 1], [], []>} : vector<8x32xf32>, vector<32x144xf32>, vector<8x144xf32> -> vector<8x144xf32>
    %c32 = arith.constant 32 : index
    %c0_3 = arith.constant 0 : index
    %3 = vector.load %arg2[%c32, %c0_3] : memref<33x144xf32, #tpu.memory_space<vmem>>, vector<1x144xf32>
    %4 = vector.broadcast %3 : vector<1x144xf32> to vector<8x144xf32>
    %5 = arith.addf %2, %4 : vector<8x144xf32>
    %6 = vector.extract_strided_slice %5 {offsets = [0, 0], sizes = [8, 128], strides = [1, 1]} : vector<8x144xf32> to vector<8x128xf32>
    %7 = vector.extract_strided_slice %5 {offsets = [0, 128], sizes = [8, 8], strides = [1, 1]} : vector<8x144xf32> to vector<8x8xf32>
    %8 = vector.extract_strided_slice %5 {offsets = [0, 136], sizes = [8, 8], strides = [1, 1]} : vector<8x144xf32> to vector<8x8xf32>
    %cst_4 = arith.constant 2.000000e-01 : f32
    %9 = vector.broadcast %cst_4 : f32 to vector<8x128xf32>
    %10 = arith.mulf %9, %6 : vector<8x128xf32>
    %11 = arith.maximumf %6, %10 : vector<8x128xf32>
    %c0_5 = arith.constant 0 : index
    %c0_6 = arith.constant 0 : index
    %12 = vector.load %arg1[%c0_5, %c0_6] : memref<8x16xf32, #tpu.memory_space<vmem>>, vector<8x16xf32>
    %c0_7 = arith.constant 0 : index
    %c0_8 = arith.constant 0 : index
    %13 = vector.load %arg3[%c0_7, %c0_8] : memref<24x128xf32, #tpu.memory_space<vmem>>, vector<16x128xf32>
    %cst_9 = arith.constant dense<0.000000e+00> : vector<8x128xf32>
    %14 = tpu.matmul %12, %13, %cst_9 {dimension_numbers = #tpu.dot_dimension_numbers<[1], [0], [0], [1], [0, 0, 1, 1], [], []>} : vector<8x16xf32>, vector<16x128xf32>, vector<8x128xf32> -> vector<8x128xf32>
    %15 = arith.addf %11, %14 : vector<8x128xf32>
    %16 = arith.mulf %15, %15 : vector<8x128xf32>
    %17 = tpu.concatenate %15, %16 in 0 : vector<8x128xf32>, vector<8x128xf32> -> vector<16x128xf32>
    %c0_10 = arith.constant 0 : index
    %c0_11 = arith.constant 0 : index
    %18 = vector.load %arg4[%c0_10, %c0_11] : memref<128x8xf32, #tpu.memory_space<vmem>>, vector<128x8xf32>
    %cst_12 = arith.constant dense<0.000000e+00> : vector<16x8xf32>
    %19 = tpu.matmul %17, %18, %cst_12 {dimension_numbers = #tpu.dot_dimension_numbers<[1], [0], [0], [1], [0, 0, 1, 1], [], []>} : vector<16x128xf32>, vector<128x8xf32>, vector<16x8xf32> -> vector<16x8xf32>
    %20 = vector.extract_strided_slice %19 {offsets = [0, 0], sizes = [8, 8], strides = [1, 1]} : vector<16x8xf32> to vector<8x8xf32>
    %21 = vector.extract_strided_slice %19 {offsets = [8, 0], sizes = [8, 8], strides = [1, 1]} : vector<16x8xf32> to vector<8x8xf32>
    %22 = arith.mulf %20, %20 : vector<8x8xf32>
    %23 = arith.subf %21, %22 : vector<8x8xf32>
    %cst_13 = arith.constant 0.000000e+00 : f32
    %24 = vector.broadcast %cst_13 : f32 to vector<8x8xf32>
    %25 = arith.maximumf %23, %24 : vector<8x8xf32>
    %cst_14 = arith.constant 9.99999974E-6 : f32
    %26 = vector.broadcast %cst_14 : f32 to vector<8x8xf32>
    %27 = arith.addf %25, %26 : vector<8x8xf32>
    %28 = math.rsqrt %27 : vector<8x8xf32>
    %29 = arith.mulf %7, %28 : vector<8x8xf32>
    %30 = arith.mulf %29, %20 : vector<8x8xf32>
    %31 = arith.subf %8, %30 : vector<8x8xf32>
    %32 = tpu.concatenate %29, %31 in 0 : vector<8x8xf32>, vector<8x8xf32> -> vector<16x8xf32>
    %c16 = arith.constant 16 : index
    %c0_15 = arith.constant 0 : index
    %33 = vector.load %arg3[%c16, %c0_15] : memref<24x128xf32, #tpu.memory_space<vmem>>, vector<8x128xf32>
    %cst_16 = arith.constant dense<0.000000e+00> : vector<16x128xf32>
    %34 = tpu.matmul %32, %33, %cst_16 {dimension_numbers = #tpu.dot_dimension_numbers<[1], [0], [0], [1], [0, 0, 1, 1], [], []>} : vector<16x8xf32>, vector<8x128xf32>, vector<16x128xf32> -> vector<16x128xf32>
    %35 = vector.extract_strided_slice %34 {offsets = [0, 0], sizes = [8, 128], strides = [1, 1]} : vector<16x128xf32> to vector<8x128xf32>
    %36 = arith.mulf %35, %15 : vector<8x128xf32>
    %37 = vector.extract_strided_slice %34 {offsets = [8, 0], sizes = [8, 128], strides = [1, 1]} : vector<16x128xf32> to vector<8x128xf32>
    %38 = arith.addf %36, %37 : vector<8x128xf32>
    %c0_17 = arith.constant 0 : index
    %c0_18 = arith.constant 0 : index
    %39 = vector.load %arg5[%c0_17, %c0_18] : memref<8x128xf32, #tpu.memory_space<vmem>>, vector<8x128xf32>
    tpu.vector_store %arg5[%c0_17, %c0_18], %38 {strides = array<i32>} : memref<8x128xf32, #tpu.memory_space<vmem>>, vector<8x128xf32>,
    return
  }
}

</mosaic_0001>

<llo_original>
// kernel: input_block_forward.1
$region0: #{input_block_forward.1}
  #allocation0 [shape = 'u32[]', space=smem, size = 0x4, offset = 0x4, fixed_abs, tag = 'smem constant byte address 0x4 - core index']
  #allocation1 [shape = 'u32[72,128]{1,0:T(1,128)}', space=vmem, size = 0x9000, scoped, tag = 'internal scratch']
  %s0 = inlined_call_operand.vmem [shape: f32[8,32], index: 0, kind: input, shape index: {}]
  %s1 = inlined_call_operand.vmem [shape: f32[8,16], index: 1, kind: input, shape index: {}]
  %s2 = inlined_call_operand.vmem [shape: f32[33,144], index: 2, kind: input, shape index: {}]
  %s3 = inlined_call_operand.vmem [shape: f32[24,128], index: 3, kind: input, shape index: {}]
  %s4 = inlined_call_operand.vmem [shape: f32[128,8], index: 4, kind: input, shape index: {}]
  %s5 = inlined_call_operand.vmem [shape: f32[8,128], index: 5, kind: output, shape index: {}]
  %s6 = sld [smem:[#allocation0]]
  $region30: #{input_block_forward.1} parent=0
    _
  %s8 = ssub.s32 1, %s6
  %s9 = scalar_select 0, %s8, %s6
  // Predicated region
  $region2: #{input_block_forward.1} parent=0 // pred_check
    _
  $region3: #{input_block_forward.1} parent=0 // pred_check_branch
    %11 = sbr.rel (0) target = $region5
  $region4: #{input_block_forward.1} parent=0 // pred_region
    _
  $region5: #{input_block_forward.1} parent=0 // pred_fallthru
    _
  // Predicated region
  $region6: #{input_block_forward.1} parent=0 // pred_check
    _
  $region7: #{input_block_forward.1} parent=0 // pred_check_branch
    %13 = sbr.rel (0) target = $region9
  $region8: #{input_block_forward.1} parent=0 // pred_region
    _
  $region9: #{input_block_forward.1} parent=0 // pred_fallthru
    _
  // Predicated region
  $region10: #{input_block_forward.1} parent=0 // pred_check
    _
  $region11: #{input_block_forward.1} parent=0 // pred_check_branch
    %15 = sbr.rel (0) target = $region13
  $region12: #{input_block_forward.1} parent=0 // pred_region
    _
  $region13: #{input_block_forward.1} parent=0 // pred_fallthru
    _
  // Predicated region
  $region14: #{input_block_forward.1} parent=0 // pred_check
    _
  $region15: #{input_block_forward.1} parent=0 // pred_check_branch
    %17 = sbr.rel (0) target = $region17
  $region16: #{input_block_forward.1} parent=0 // pred_region
    _
  $region17: #{input_block_forward.1} parent=0 // pred_fallthru
    _
  // Predicated region
  $region18: #{input_block_forward.1} parent=0 // pred_check
    _
  $region19: #{input_block_forward.1} parent=0 // pred_check_branch
    %19 = sbr.rel (0) target = $region21
  $region20: #{input_block_forward.1} parent=0 // pred_region
    _
  $region21: #{input_block_forward.1} parent=0 // pred_fallthru
    _
  %v20 = vld [vmem:[%s0] sm:$0xff]
  %v21 = vld [vmem:[%s2] sm:$0xff]
  %v22 = vld [vmem:[%s2 + $0x8] sm:$0xff]
  %v23 = vld [vmem:[%s2 + $0x10] sm:$0xff]
  %v24 = vld [vmem:[%s2 + $0x18] sm:$0xff]
  %v25 = vld [vmem:[%s2 + $0x20] sm:$0xff]
  %v26 = vld [vmem:[%s2 + $0x28] sm:$0xff]
  %v27 = vld [vmem:[%s2 + $0x30] sm:$0xff]
  %v28 = vld [vmem:[%s2 + $0x38] sm:$0xff]
  %s29 = scalar_lea.vmem %s2, 64
  %v30 = vld [vmem:[%s29] ss:$8 sm:$0x3]
  %v32 = vperm.slane %v30, 0
  %v33 = vperm.slane %v30, 1
  %vm36 = vcmask 261120
  %v38 = vsel %vm36, %v20, 0
  %40 = vmatpush.msra.mxu0 0.0
  %41 = vmatpush.msra.mxu0 0.0
  %42 = vmatpush.msra.mxu0 0.0
  %43 = vmatpush.msra.mxu0 0.0
  %44 = vmatpush.msra.mxu0 0.0
  %45 = vmatpush.msra.mxu0 0.0
  %46 = vmatpush.msra.mxu0 0.0
  %47 = vmatpush.msra.mxu0 0.0
  %48 = vmatpush.msra.mxu0 0.0
  %49 = vmatpush.msra.mxu0 0.0
  %50 = vmatpush.msra.mxu0 0.0
  %51 = vmatpush.msra.mxu0 0.0
  %52 = vmatpush.msra.mxu0 %v27
  %53 = vmatpush.msra.mxu0 %v25
  %54 = vmatpush.msra.mxu0 %v23
  %55 = vmatpush.msra.mxu0 %v21
  %56 = vmatmul.f32.gmra.mxu0 %v38
  %v57 = vpop.f32.mrf.mxu0
  %v58 = vadd.f32 %v32, %v57
  %59 = vdwg.mxu0
  %60 = vmatpush.msra.mxu0 0.0
  %61 = vmatpush.msra.mxu0 0.0
  %62 = vmatpush.msra.mxu0 0.0
  %63 = vmatpush.msra.mxu0 0.0
  %64 = vmatpush.msra.mxu0 0.0
  %65 = vmatpush.msra.mxu0 0.0
  %66 = vmatpush.msra.mxu0 0.0
  %67 = vmatpush.msra.mxu0 0.0
  %68 = vmatpush.msra.mxu0 0.0
  %69 = vmatpush.msra.mxu0 0.0
  %70 = vmatpush.msra.mxu0 0.0
  %71 = vmatpush.msra.mxu0 0.0
  %72 = vmatpush.msra.mxu0 %v28
  %73 = vmatpush.msra.mxu0 %v26
  %74 = vmatpush.msra.mxu0 %v24
  %75 = vmatpush.msra.mxu0 %v22
  %76 = vmatmul.f32.gmra.mxu0 %v38
  %v77 = vpop.f32.mrf.mxu0
  %v78 = vadd.f32 %v33, %v77
  %79 = vdwg.mxu0
  %v80 = vmul.f32 %v58, 0.2
  %v81 = vmax.f32 %v58, %v80
  %v82 = vld [vmem:[%s1] sm:$0xff]
  %v83 = vld [vmem:[%s3] sm:$0xff]
  %v84 = vld [vmem:[%s3 + $0x8] sm:$0xff]
  %vm85 = vcmask 130048
  %v87 = vsel %vm85, %v82, 0
  %89 = vmatpush.msra.mxu0 0.0
  %90 = vmatpush.msra.mxu0 0.0
  %91 = vmatpush.msra.mxu0 0.0
  %92 = vmatpush.msra.mxu0 0.0
  %93 = vmatpush.msra.mxu0 0.0
  %94 = vmatpush.msra.mxu0 0.0
  %95 = vmatpush.msra.mxu0 0.0
  %96 = vmatpush.msra.mxu0 0.0
  %97 = vmatpush.msra.mxu0 0.0
  %98 = vmatpush.msra.mxu0 0.0
  %99 = vmatpush.msra.mxu0 0.0
  %100 = vmatpush.msra.mxu0 0.0
  %101 = vmatpush.msra.mxu0 0.0
  %102 = vmatpush.msra.mxu0 0.0
  %103 = vmatpush.msra.mxu0 %v84
  %104 = vmatpush.msra.mxu0 %v83
  %105 = vmatmul.f32.gmra.mxu0 %v87
  %v106 = vpop.f32.mrf.mxu0
  %v107 = vadd.f32 0.0, %v106
  %108 = vdwg.mxu0
  %v109 = vadd.f32 %v81, %v107
  %v110 = vmul.f32 %v109, %v109
  %v111 = vld [vmem:[%s4] sm:$0xff]
  %v112 = vld [vmem:[%s4 + $0x8] sm:$0xff]
  %v113 = vld [vmem:[%s4 + $0x10] sm:$0xff]
  %v114 = vld [vmem:[%s4 + $0x18] sm:$0xff]
  %v115 = vld [vmem:[%s4 + $0x20] sm:$0xff]
  %v116 = vld [vmem:[%s4 + $0x28] sm:$0xff]
  %v117 = vld [vmem:[%s4 + $0x30] sm:$0xff]
  %v118 = vld [vmem:[%s4 + $0x38] sm:$0xff]
  %v119 = vld [vmem:[%s4 + $0x40] sm:$0xff]
  %v120 = vld [vmem:[%s4 + $0x48] sm:$0xff]
  %v121 = vld [vmem:[%s4 + $0x50] sm:$0xff]
  %v122 = vld [vmem:[%s4 + $0x58] sm:$0xff]
  %v123 = vld [vmem:[%s4 + $0x60] sm:$0xff]
  %v124 = vld [vmem:[%s4 + $0x68] sm:$0xff]
  %v125 = vld [vmem:[%s4 + $0x70] sm:$0xff]
  %v126 = vld [vmem:[%s4 + $0x78] sm:$0xff]
  %127 = vmatpush.msra.mxu0 %v126
  %128 = vmatpush.msra.mxu0 %v125
  %129 = vmatpush.msra.mxu0 %v124
  %130 = vmatpush.msra.mxu0 %v123
  %131 = vmatpush.msra.mxu0 %v122
  %132 = vmatpush.msra.mxu0 %v121
  %133 = vmatpush.msra.mxu0 %v120
  %134 = vmatpush.msra.mxu0 %v119
  %135 = vmatpush.msra.mxu0 %v118
  %136 = vmatpush.msra.mxu0 %v117
  %137 = vmatpush.msra.mxu0 %v116
  %138 = vmatpush.msra.mxu0 %v115
  %139 = vmatpush.msra.mxu0 %v114
  %140 = vmatpush.msra.mxu0 %v113
  %141 = vmatpush.msra.mxu0 %v112
  %142 = vmatpush.msra.mxu0 %v111
  %143 = vmatmul.f32.gmra.mxu0 %v109
  %v144 = vpop.f32.mrf.mxu0
  %v145 = vadd.f32 0.0, %v144
  %146 = vmatmul.f32.gmra.mxu0 %v110
  %v147 = vpop.f32.mrf.mxu0
  %v148 = vadd.f32 0.0, %v147
  %149 = vdwg.mxu0
  %v150 = vmul.f32 %v145, %v145
  %v151 = vsub.f32 %v148, %v150
  %v152 = vmax.f32 %v151, 0.0
  %v153 = vadd.f32 %v152, 1e-05
  %v154 = vrsqrt.pop %v153
  %v155 = vmul.f32 %v154, %v153
  %v156 = vmul.f32 %v155, %v154
  %v157 = vmul.f32 0.5, %v156
  %v158 = vsub.f32 1.5, %v157
  %v159 = vmul.f32 %v154, %v158
  %vm160 = vweird.f32 %v153
  %vm161 = vweird.f32 %v154
  %vm162 = vmor %vm160, %vm161
  %v163 = vsel %vm162, %v154, %v159
  %v164 = vmul.f32 %v78, %v163
  %v165 = vmul.f32 %v164, %v145
  %167 = vrot.lane.b32.xlu0 %v165, 8
  %v168 = vpop.permute.xlu0 %167
  %v170 = vsub.f32 %v78, %v168
  %172 = vrot.lane.b32.xlu0 %v170, 120
  %v173 = vpop.permute.xlu0 %172
  %v174 = vld [vmem:[%s3 + $0x10] sm:$0xff]
  %vm175 = vcmask 64512
  %v177 = vsel %vm175, %v164, 0
  %v179 = vsel %vm175, %v173, 0
  %181 = vmatpush.msra.mxu0 0.0
  %182 = vmatpush.msra.mxu0 0.0
  %183 = vmatpush.msra.mxu0 0.0
  %184 = vmatpush.msra.mxu0 0.0
  %185 = vmatpush.msra.mxu0 0.0
  %186 = vmatpush.msra.mxu0 0.0
  %187 = vmatpush.msra.mxu0 0.0
  %188 = vmatpush.msra.mxu0 0.0
  %189 = vmatpush.msra.mxu0 0.0
  %190 = vmatpush.msra.mxu0 0.0
  %191 = vmatpush.msra.mxu0 0.0
  %192 = vmatpush.msra.mxu0 0.0
  %193 = vmatpush.msra.mxu0 0.0
  %194 = vmatpush.msra.mxu0 0.0
  %195 = vmatpush.msra.mxu0 0.0
  %196 = vmatpush.msra.mxu0 %v174
  %197 = vmatmul.f32.gmra.mxu0 %v177
  %v198 = vpop.f32.mrf.mxu0
  %v199 = vadd.f32 0.0, %v198
  %200 = vmatmul.f32.gmra.mxu0 %v179
  %v201 = vpop.f32.mrf.mxu0
  %v202 = vadd.f32 0.0, %v201
  %203 = vdwg.mxu0
  %v204 = vmul.f32 %v199, %v109
  %v205 = vadd.f32 %v204, %v202
  %206 = vst [vmem:[%s5] sm:$0xff] %v205
  // Predicated region
  $region22: #{input_block_forward.1} parent=0 // pred_check
    _
  $region23: #{input_block_forward.1} parent=0 // pred_check_branch
    %208 = sbr.rel (0) target = $region25
  $region24: #{input_block_forward.1} parent=0 // pred_region
    _
  $region25: #{input_block_forward.1} parent=0 // pred_fallthru
    _
  // Predicated region
  $region26: #{input_block_forward.1} parent=0 // pred_check
    _
  $region27: #{input_block_forward.1} parent=0 // pred_check_branch
    %210 = sbr.rel (0) target = $region29
  $region28: #{input_block_forward.1} parent=0 // pred_region
    _
  $region29: #{input_block_forward.1} parent=0 // pred_fallthru
    _

</llo_original>
